<compile_context>
chip_gen: v5e
topology: v5e:2x2
jax: 0.10.0
libtpu: 0.0.40
codegen_flags: <defaults>
</compile_context>

<pallas_src>
import math

import jax
import jax.numpy as jnp
from jax import lax
from jax.experimental import pallas as pl
from jax.experimental.pallas import tpu as pltpu


def _round_up(x, m):
    return (x + m - 1) // m * m


def _pick_tile(dim, max_tile, align=128):
    """Largest tile (multiple of `align`, <= max_tile) minimizing pad waste."""
    dim_aligned = _round_up(dim, align)
    if dim_aligned <= max_tile:
        return dim_aligned
    best_t, best_waste = None, None
    for t in range(max_tile - max_tile % align, align - 1, -align):
        waste = _round_up(dim, t) - dim
        if best_waste is None or waste < best_waste:
            best_t, best_waste = t, waste
            if best_waste == 0:
                break
    return best_t


def _split_tile(padded, tile, align=128):
    """Largest multiple of `align` strictly smaller than `tile` dividing `padded`."""
    t = ((tile - 1) // align) * align
    while t >= align:
        if padded % t == 0:
            return t
        t -= align
    return None


def _weight_spec(tk, tn, deep):
    """Weight BlockSpec in (K, N) layout; optionally 3-deep buffered."""
    idx = lambda i, j, k: (k, j)
    if deep and hasattr(pl, "Buffered"):
        try:
            return pl.BlockSpec((tk, tn), idx, pipeline_mode=pl.Buffered(3))
        except TypeError:  # older jax without pipeline_mode kwarg
            pass
    return pl.BlockSpec((tk, tn), idx)


def _make_fc_kernel(use_relu):
    def kernel(x_ref, w_ref, b_ref, o_ref):
        k = pl.program_id(2)

        @pl.when(k == 0)
        def _():
            o_ref[...] = jnp.zeros_like(o_ref)

        # x: (tm, tk) bf16, w: (tk, tn) bf16 -> MXU matmul, f32 accumulation
        # directly into the output block (resident across the K grid axis).
        o_ref[...] += jnp.dot(x_ref[...], w_ref[...],
                              preferred_element_type=jnp.float32)

        # Bias + ReLU epilogue in f32, once per output tile.
        @pl.when(k == pl.num_programs(2) - 1)
        def _():
            y = o_ref[...] + b_ref[...]
            if use_relu:
                y = jnp.maximum(y, 0.0)
            o_ref[...] = y

    return kernel


def prepare_fc_params(weight, bias, *, max_tn=512, max_tk=2048,
                      compute_dtype=jnp.bfloat16):
    """One-time parameter prep for `fc_forward`.

    weight: (out_size, in_size)  -- nn.Linear layout.   bias: (out_size,).
    The weight is transposed to MXU-friendly (K, N), padded to tile multiples
    and cast to `compute_dtype` exactly once, outside the per-call hot path.
    """
    out_size, in_size = weight.shape
    tn = _pick_tile(out_size, max_tn)
    tk = _pick_tile(in_size, max_tk)
    n_pad = _round_up(out_size, tn)
    k_pad = _round_up(in_size, tk)

    w_kn = jnp.asarray(weight).T                       # (K, N)
    if (k_pad, n_pad) != (in_size, out_size):
        w_kn = jnp.pad(w_kn, ((0, k_pad - in_size), (0, n_pad - out_size)))
    w_kn = w_kn.astype(compute_dtype)

    b = jnp.asarray(bias, jnp.float32).reshape(1, out_size)
    if n_pad != out_size:
        b = jnp.pad(b, ((0, 0), (0, n_pad - out_size)))

    return {"w_kn": w_kn, "b": b, "in_size": in_size, "out_size": out_size,
            "tn": tn, "tk": tk, "n_pad": n_pad, "k_pad": k_pad}


def fc_forward(x, params, *, use_relu=True, dropout_r=0.0, max_tm=512):
    """FC.forward: relu(x @ W.T + b) with pre-prepared params. x: (..., in_size)."""
    # TODO(synk): train-mode dropout (dropout_r > 0) not implemented; the
    # module default dropout_r=0.0 and eval-mode dropout are both identity.
    in_size, out_size = params["in_size"], params["out_size"]
    k_pad, n_pad = params["k_pad"], params["n_pad"]
    tk, tn = params["tk"], params["tn"]
    w_kn, b = params["w_kn"], params["b"]
    assert x.shape[-1] == in_size

    lead = x.shape[:-1]
    m = int(math.prod(lead)) if lead else 1

    tm = _pick_tile(m, max_tm, align=8)
    m_pad = _round_up(m, tm)

    # v7x megacore: make sure the "parallel" (M, N) grid has >= 2 blocks so
    # both TensorCores get work.  Prefer splitting N (doesn't duplicate the
    # weight streaming); fall back to splitting M.
    if (m_pad // tm) * (n_pad // tn) < 2:
        tn_alt = _split_tile(n_pad, tn, align=128)
        if tn_alt is not None:
            tn = tn_alt
        elif m_pad % 16 == 0 and m_pad // 2 >= 8:
            tm = m_pad // 2

    grid = (m_pad // tm, n_pad // tn, k_pad // tk)

    x2d = x.reshape(m, in_size).astype(w_kn.dtype)
    if (m_pad, k_pad) != (m, in_size):            # skip the pad when aligned
        x2d = jnp.pad(x2d, ((0, m_pad - m), (0, k_pad - in_size)))

    # Deeper weight buffering helps hide DMA latency when M is small and the
    # kernel mostly streams the weight.
    deep_w = (grid[0] == 1) and (grid[1] * grid[2] >= 3)

    def _call(deep):
        return pl.pallas_call(
            _make_fc_kernel(use_relu),
            out_shape=jax.ShapeDtypeStruct((m_pad, n_pad), jnp.float32),
            grid_spec=pltpu.PrefetchScalarGridSpec(
                num_scalar_prefetch=0,
                grid=grid,
                in_specs=[
                    pl.BlockSpec((tm, tk), lambda i, j, k: (i, k)),
                    _weight_spec(tk, tn, deep),
                    pl.BlockSpec((1, tn), lambda i, j, k: (0, j)),
                ],
                out_specs=pl.BlockSpec((tm, tn), lambda i, j, k: (i, j)),
            ),
            compiler_params=pltpu.CompilerParams(
                dimension_semantics=("parallel", "parallel", "arbitrary"),
                # v7x has 64 MiB VMEM per TensorCore; keep scoped use below.
                vmem_limit_bytes=48 * 1024 * 1024,
            ),
        )(x2d, w_kn, b)

    if deep_w:
        try:
            out2d = jax.block_until_ready(_call(True))
        except Exception:  # pragma: no cover - fall back to default 2-deep
            out2d = _call(False)
    else:
        out2d = _call(False)

    if (m_pad, n_pad) != (m, out_size):           # skip the slice when aligned
        out2d = out2d[:m, :out_size]
    return out2d.reshape(*lead, out_size).astype(x.dtype)


if __name__ == "__main__":
    key = jax.random.PRNGKey(0)

    def make_case(k, lead, in_size, out_size):
        kx, kw, kb = jax.random.split(k, 3)
        bound = 1.0 / (in_size ** 0.5)
        w = jax.random.uniform(kw, (out_size, in_size), jnp.float32, -bound, bound)
        b = jax.random.uniform(kb, (out_size,), jnp.float32, -bound, bound)
        x = jax.random.normal(kx, (*lead, in_size), jnp.float32)
        return x, w, b

    def ref_fc_bf16(x, w, b):
        # Reference with the same bf16 MXU-input quantization (f32 accumulate).
        y = jnp.einsum("...i,oi->...o", x.astype(jnp.bfloat16),
                       w.astype(jnp.bfloat16),
                       preferred_element_type=jnp.float32) + b
        return jnp.maximum(y, 0.0)

    k1, k2 = jax.random.split(key)

    # Case 1: tiny FC (batch=2, seq=8, in=32, out=64); padded to lane-dense
    # 128-wide tiles internally and sliced back.
    x1, w1, b1 = make_case(k1, (2, 8), 32, 64)
    p1 = prepare_fc_params(w1, b1)
    out1 = fc_forward(x1, p1)
    jax.block_until_ready(out1)
    assert out1.shape == (2, 8, 64)
    assert jnp.allclose(out1, ref_fc_bf16(x1, w1, b1), atol=2e-3, rtol=2e-3)

    # Case 2: exercises adaptive zero-waste tiling + the v7x grid-splitting
    # path (m=384, in=640, out=384 -> grid (1, 3, 1), no pad waste).
    x2, w2, b2 = make_case(k2, (4, 96), 640, 384)
    p2 = prepare_fc_params(w2, b2)
    out2 = fc_forward(x2, p2)
    jax.block_until_ready(out2)
    assert out2.shape == (4, 96, 384)
    assert jnp.allclose(out2, ref_fc_bf16(x2, w2, b2), atol=2e-3, rtol=2e-3)

    # Loose sanity check against the exact f32 reference (bf16 MXU inputs).
    ref2_f32 = jnp.maximum(
        jnp.einsum("...i,oi->...o", x2, w2,
                   precision=lax.Precision.HIGHEST) + b2, 0.0)
    assert jnp.allclose(out2, ref2_f32, atol=1e-1, rtol=5e-2)

    print("KERNEL_OK")
</pallas_src>

<mosaic_0001>
module attributes {stable_mosaic.version = 11 : i64} {
  func.func @kernel(%arg0: i32, %arg1: i32, %arg2: i32, %arg3: memref<8x128xbf16, #tpu.memory_space<vmem>>, %arg4: memref<128x128xbf16, #tpu.memory_space<vmem>>, %arg5: memref<1x128xf32, #tpu.memory_space<vmem>>, %arg6: memref<8x128xf32, #tpu.memory_space<vmem>>) attributes {dimension_semantics = [#tpu.dimension_semantics<parallel>, #tpu.dimension_semantics<parallel>, #tpu.dimension_semantics<arbitrary>], iteration_bounds = array<i64: 2, 1, 1>, scalar_prefetch = 0 : i64, scratch_operands = 0 : i64, tpu.core_type = #tpu.core_type<tc>, window_params = [{transform_indices = @transform_0, window_bounds = array<i64: 8, 128>}, {transform_indices = @transform_1, window_bounds = array<i64: 128, 128>}, {transform_indices = @transform_2, window_bounds = array<i64: 1, 128>}, {transform_indices = @transform_3, window_bounds = array<i64: 8, 128>}]} {
    %c0_i32 = arith.constant 0 : i32
    %0 = arith.cmpi eq, %arg2, %c0_i32 : i32
    %1 = arith.extui %0 : i1 to i32
    %c0_i32_0 = arith.constant 0 : i32
    %2 = arith.cmpi ne, %1, %c0_i32_0 : i32
    scf.if %2 {
      %cst_10 = arith.constant 0.000000e+00 : f32
      %12 = vector.broadcast %cst_10 : f32 to vector<8x128xf32>
      %c0_11 = arith.constant 0 : index
      %c0_12 = arith.constant 0 : index
      %13 = vector.load %arg6[%c0_11, %c0_12] : memref<8x128xf32, #tpu.memory_space<vmem>>, vector<8x128xf32>
      tpu.vector_store %arg6[%c0_11, %c0_12], %12 {strides = array<i32>} : memref<8x128xf32, #tpu.memory_space<vmem>>, vector<8x128xf32>,
    } else {
    }
    %c0 = arith.constant 0 : index
    %c0_1 = arith.constant 0 : index
    %3 = vector.load %arg6[%c0, %c0_1] : memref<8x128xf32, #tpu.memory_space<vmem>>, vector<8x128xf32>
    %c0_2 = arith.constant 0 : index
    %c0_3 = arith.constant 0 : index
    %4 = vector.load %arg3[%c0_2, %c0_3] : memref<8x128xbf16, #tpu.memory_space<vmem>>, vector<8x128xbf16>
    %c0_4 = arith.constant 0 : index
    %c0_5 = arith.constant 0 : index
    %5 = vector.load %arg4[%c0_4, %c0_5] : memref<128x128xbf16, #tpu.memory_space<vmem>>, vector<128x128xbf16>
    %cst = arith.constant dense<0.000000e+00> : vector<8x128xf32>
    %6 = tpu.matmul %4, %5, %cst {dimension_numbers = #tpu.dot_dimension_numbers<[1], [0], [0], [1], [0, 0, 1, 1], [], []>} : vector<8x128xbf16>, vector<128x128xbf16>, vector<8x128xf32> -> vector<8x128xf32>
    %7 = arith.addf %3, %6 : vector<8x128xf32>
    %c0_6 = arith.constant 0 : index
    %c0_7 = arith.constant 0 : index
    %8 = vector.load %arg6[%c0_6, %c0_7] : memref<8x128xf32, #tpu.memory_space<vmem>>, vector<8x128xf32>
    tpu.vector_store %arg6[%c0_6, %c0_7], %7 {strides = array<i32>} : memref<8x128xf32, #tpu.memory_space<vmem>>, vector<8x128xf32>,
    %c0_i32_8 = arith.constant 0 : i32
    %9 = arith.cmpi eq, %arg2, %c0_i32_8 : i32
    %10 = arith.extui %9 : i1 to i32
    %c0_i32_9 = arith.constant 0 : i32
    %11 = arith.cmpi ne, %10, %c0_i32_9 : i32
    scf.if %11 {
      %c0_10 = arith.constant 0 : index
      %c0_11 = arith.constant 0 : index
      %12 = vector.load %arg6[%c0_10, %c0_11] : memref<8x128xf32, #tpu.memory_space<vmem>>, vector<8x128xf32>
      %c0_12 = arith.constant 0 : index
      %c0_13 = arith.constant 0 : index
      %13 = vector.load %arg5[%c0_12, %c0_13] : memref<1x128xf32, #tpu.memory_space<vmem>>, vector<1x128xf32>
      %14 = vector.broadcast %13 : vector<1x128xf32> to vector<8x128xf32>
      %15 = arith.addf %12, %14 : vector<8x128xf32>
      %cst_14 = arith.constant 0.000000e+00 : f32
      %16 = vector.broadcast %cst_14 : f32 to vector<8x128xf32>
      %17 = arith.maximumf %15, %16 : vector<8x128xf32>
      %c0_15 = arith.constant 0 : index
      %c0_16 = arith.constant 0 : index
      %18 = vector.load %arg6[%c0_15, %c0_16] : memref<8x128xf32, #tpu.memory_space<vmem>>, vector<8x128xf32>
      tpu.vector_store %arg6[%c0_15, %c0_16], %17 {strides = array<i32>} : memref<8x128xf32, #tpu.memory_space<vmem>>, vector<8x128xf32>,
    } else {
    }
    return
  }
  func.func @transform_0(%arg0: i32, %arg1: i32, %arg2: i32) -> (i32, i32) {
    %c0_i32 = arith.constant 0 : i32
    return %arg0, %arg2 : i32, i32
  }
  func.func @transform_1(%arg0: i32, %arg1: i32, %arg2: i32) -> (i32, i32) {
    %c0_i32 = arith.constant 0 : i32
    return %arg2, %arg1 : i32, i32
  }
  func.func @transform_2(%arg0: i32, %arg1: i32, %arg2: i32) -> (i32, i32) {
    %c0_i32 = arith.constant 0 : i32
    %c0_i32_0 = arith.constant 0 : i32
    return %c0_i32, %arg1 : i32, i32
  }
  func.func @transform_3(%arg0: i32, %arg1: i32, %arg2: i32) -> (i32, i32) {
    %c0_i32 = arith.constant 0 : i32
    return %arg0, %arg1 : i32, i32
  }
}

</mosaic_0001>

<llo_original>
// kernel: tpu_custom_call.1
$region0: #{tpu_custom_call.1}
  #allocation0 [shape = 'u32[]', space=smem, size = 0x4, offset = 0x4, fixed_abs, tag = 'smem constant byte address 0x4 - core index']
  #allocation1 [shape = 'u32[72,128]{1,0:T(1,128)}', space=vmem, size = 0x9000, scoped, tag = 'internal scratch']
  %s0 = inlined_call_operand.hbm [shape: bf16[16,128], index: 0, kind: input, shape index: {}]
  %s1 = inlined_call_operand.hbm [shape: bf16[128,128], index: 1, kind: input, shape index: {}]
  %s2 = inlined_call_operand.vmem [shape: f32[1,128], index: 2, kind: input, shape index: {}]
  %s3 = inlined_call_operand.hbm [shape: f32[16,128], index: 3, kind: output, shape index: {}]
  %s4 = sld [smem:[#allocation0]]
  $region61: #{tpu_custom_call.1} parent=0
    _
  %s6 = ssub.s32 1, %s4
  %s7 = scalar_select 0, %s6, %s4
  $region1: #{tpu_custom_call.1} parent=0
    #allocation2 [shape = 'u8[4096]{0}', space=vmem, size = 0x1000, scoped, tag = 'input window, operand 0']
    #allocation3 [shape = 's32[2]{0}', space=sflag, size = 0x8, scoped, tag = 'scoped memory for tpu_custom_call.1']
    #allocation4 [shape = 's32[2]{0}', space=sflag, size = 0x8, scoped, tag = 'scoped memory for tpu_custom_call.1']
    #allocation5 [shape = 'u8[32768]{0}', space=vmem, size = 0x8000, scoped, tag = 'input window, operand 1, single buffered']
    #allocation6 [shape = 's32[1]{0}', space=sflag, size = 0x4, scoped, tag = 'scoped memory for tpu_custom_call.1']
    #allocation7 [shape = 'u8[8192]{0}', space=vmem, size = 0x2000, scoped, tag = 'output window, operand 0']
    %8 = vsyncpa [#allocation3], 0
    %s9 = scalar_lea.sflag [#allocation3], 1
    %10 = vsyncpa %s9, 0
    %11 = vsyncpa [#allocation6], 0
    %12 = vsyncpa [#allocation4], 0
    %s13 = scalar_lea.sflag [#allocation4], 1
    %14 = vsyncpa %s13, 0
    loop: start=0, step=1, limit=4
    $region2: #{tpu_custom_call.1} parent=1 // loop_pre_header
      _
    $region3: #{tpu_custom_call.1} parent=1 // loop_header
      %s16 = sphi 0, %s20
      %p17 = scmp.ge.s32.totalorder %s16, 4
      %s23 = sphi 0, %s42
      %s24 = sphi 0, %s38
      %s25 = sphi 0, %s34
      %s26 = sphi 0, %s23
      %s27 = sphi 0, %s24
      %s28 = sphi 0, %s25
      %s29 = sphi 0, %s26
      %s30 = sphi 0, %s27
      %s31 = sphi 0, %s28
      %s47 = sphi 0, %s49
      %s50 = sphi 0, %s47
      %s51 = sphi 0, %s50
      %s67 = sphi 0, %s51
      %s75 = sphi 0, %s77
      %s78 = sphi 0, %s75
      %s79 = sphi 0, %s78
      %s95 = sphi 0, %s79
      %s101 = sphi 0, %s103
      %s104 = sphi 0, %s101
      %s105 = sphi 0, %s104
      %s121 = sphi 0, %s105
      %s129 = sphi 0, %s131
      %s132 = sphi 0, %s129
      %s133 = sphi 0, %s132
      %s149 = sphi 0, %s133
    $region4: #{tpu_custom_call.1} parent=1 // loop_header_branch
      %19 = sbr.rel (%p17) target = $region8
    $region5: #{tpu_custom_call.1} parent=1 // loop_body
      %s21 = ssub.s32 %s16, 1
      %s22 = ssub.s32 %s16, 2
      %s32 = sadd.s32 1, %s25
      %p33 = scmp.ge.s32.totalorder %s32, 1
      %s34 = scalar_select %p33, 0, %s32
      %s35 = sadd.s32 1, %s24
      %s36 = scalar_select %p33, %s35, %s24
      %p37 = scmp.ge.s32.totalorder %s36, 1
      %s38 = scalar_select %p37, 0, %s36
      %s39 = sadd.s32 1, %s23
      %s40 = scalar_select %p37, %s39, %s23
      %p41 = scmp.ge.s32.totalorder %s40, 2
      %s42 = scalar_select %p41, 0, %s40
      %s43 = ssub.s32 %s23, %s42
      %s44 = ssub.s32 %s25, %s34
      %s45 = sor.u32 %s43, %s44
      %p46 = scmp.eq.s32.totalorder %s45, 0
      %s48 = sadd.s32 %s47, 1
      %s49 = scalar_select %p46, %s47, %s48
      %p52 = pneg %p46
      %p53 = scmp.eq.s32.totalorder %s16, 1
      %p54 = por %p52, %p53
      %p55 = scmp.ne.s32.totalorder %s47, %s50
      %p56 = scmp.eq.s32.totalorder %s16, 0
      %p57 = por %p55, %p56
      %p58 = scmp.ne.s32.totalorder %s47, %s50
      %p59 = scmp.eq.s32.totalorder %s21, 1
      %p60 = por %p58, %p59
      %p61 = scmp.ne.s32.totalorder %s50, %s51
      %p62 = scmp.eq.s32.totalorder %s21, 0
      %p63 = por %p61, %p62
      %p64 = scmp.ne.s32.totalorder %s50, %s51
      %p65 = scmp.eq.s32.totalorder %s22, 1
      %p66 = por %p64, %p65
      %p68 = scmp.ne.s32.totalorder %s51, %s67
      %p69 = scmp.eq.s32.totalorder %s22, 0
      %p70 = por %p68, %p69
      %s71 = ssub.s32 %s25, %s34
      %s72 = ssub.s32 %s24, %s38
      %s73 = sor.u32 %s71, %s72
      %p74 = scmp.eq.s32.totalorder %s73, 0
      %s76 = sadd.s32 %s75, 1
      %s77 = scalar_select %p74, %s75, %s76
      %p80 = pneg %p74
      %p81 = scmp.eq.s32.totalorder %s16, 1
      %p82 = por %p80, %p81
      %p83 = scmp.ne.s32.totalorder %s75, %s78
      %p84 = scmp.eq.s32.totalorder %s16, 0
      %p85 = por %p83, %p84
      %p86 = scmp.ne.s32.totalorder %s75, %s78
      %p87 = scmp.eq.s32.totalorder %s21, 1
      %p88 = por %p86, %p87
      %p89 = scmp.ne.s32.totalorder %s78, %s79
      %p90 = scmp.eq.s32.totalorder %s21, 0
      %p91 = por %p89, %p90
      %p92 = scmp.ne.s32.totalorder %s78, %s79
      %p93 = scmp.eq.s32.totalorder %s22, 1
      %p94 = por %p92, %p93
      %p96 = scmp.ne.s32.totalorder %s79, %s95
      %p97 = scmp.eq.s32.totalorder %s22, 0
      %p98 = por %p96, %p97
      %s99 = ssub.s32 %s24, %s38
      %p100 = scmp.eq.s32.totalorder %s99, 0
      %s102 = sadd.s32 %s101, 1
      %s103 = scalar_select %p100, %s101, %s102
      %p106 = pneg %p100
      %p107 = scmp.eq.s32.totalorder %s16, 1
      %p108 = por %p106, %p107
      %p109 = scmp.ne.s32.totalorder %s101, %s104
      %p110 = scmp.eq.s32.totalorder %s16, 0
      %p111 = por %p109, %p110
      %p112 = scmp.ne.s32.totalorder %s101, %s104
      %p113 = scmp.eq.s32.totalorder %s21, 1
      %p114 = por %p112, %p113
      %p115 = scmp.ne.s32.totalorder %s104, %s105
      %p116 = scmp.eq.s32.totalorder %s21, 0
      %p117 = por %p115, %p116
      %p118 = scmp.ne.s32.totalorder %s104, %s105
      %p119 = scmp.eq.s32.totalorder %s22, 1
      %p120 = por %p118, %p119
      %p122 = scmp.ne.s32.totalorder %s105, %s121
      %p123 = scmp.eq.s32.totalorder %s22, 0
      %p124 = por %p122, %p123
      %s125 = ssub.s32 %s23, %s42
      %s126 = ssub.s32 %s24, %s38
      %s127 = sor.u32 %s125, %s126
      %p128 = scmp.eq.s32.totalorder %s127, 0
      %s130 = sadd.s32 %s129, 1
      %s131 = scalar_select %p128, %s129, %s130
      %p134 = pneg %p128
      %p135 = scmp.eq.s32.totalorder %s16, 1
      %p136 = por %p134, %p135
      %p137 = scmp.ne.s32.totalorder %s129, %s132
      %p138 = scmp.eq.s32.totalorder %s16, 0
      %p139 = por %p137, %p138
      %p140 = scmp.ne.s32.totalorder %s129, %s132
      %p141 = scmp.eq.s32.totalorder %s21, 1
      %p142 = por %p140, %p141
      %p143 = scmp.ne.s32.totalorder %s132, %s133
      %p144 = scmp.eq.s32.totalorder %s21, 0
      %p145 = por %p143, %p144
      %p146 = scmp.ne.s32.totalorder %s132, %s133
      %p147 = scmp.eq.s32.totalorder %s22, 1
      %p148 = por %p146, %p147
      %p150 = scmp.ne.s32.totalorder %s133, %s149
      %p151 = scmp.eq.s32.totalorder %s22, 0
      %p152 = por %p150, %p151
      %p153 = scmp.le.s32.totalorder 1, %s16
      %p154 = scmp.lt.s32.totalorder %s16, 3
      %p155 = pnand %p153, %p154
      %p156 = pneg %p155
      // Predicated region
      $region9: #{tpu_custom_call.1} parent=5 // pred_check
        _
      $region10: #{tpu_custom_call.1} parent=5 // pred_check_branch
        %158 = sbr.rel (%p155) target = $region12
      $region11: #{tpu_custom_call.1} parent=5 // pred_region
        %s159 = ssub.s32 %s16, 1
        // Predicated region
        $region13: #{tpu_custom_call.1} parent=11 // pred_check
          %p160 = pneg %p91
        $region14: #{tpu_custom_call.1} parent=11 // pred_check_branch
          %162 = sbr.rel (%p160) target = $region16
        $region15: #{tpu_custom_call.1} parent=11 // pred_region
          %s163 = smul.u32 16, %s28
          %165 = vsyncadd [#allocation6], 0
          %s166 = sadd.s32 %s27, %s163
          %s167 = smul.addr %s166, 4
          %s168 = scalar_lea.hbm %s1, %s167
          %s169 = sshll.u32 %s168, 4
          %s170 = int_to_ptr.hbm [resolvable:$true] %s169
          %s171 = sshll.u32 [#allocation5], 4
          %s172 = int_to_ptr.vmem [resolvable:$true] %s171
          %177 = dma.hbm_to_vmem [thread:$0]  %s170, 1024, %s172, [#allocation6], 64, 64, 4
        $region16: #{tpu_custom_call.1} parent=11 // pred_fallthru
          _
        // Predicated region
        $region17: #{tpu_custom_call.1} parent=11 // pred_check
          %p178 = pneg %p117
        $region18: #{tpu_custom_call.1} parent=11 // pred_check_branch
          %180 = sbr.rel (%p178) target = $region20
        $region19: #{tpu_custom_call.1} parent=11 // pred_region
          %p181 = scmp.lt.s32.totalorder %s27, 0
          %s182 = scalar_select %p181, %s27, 0
          %s183 = scalar_lea.vmem %s2, %s182
        $region20: #{tpu_custom_call.1} parent=11 // pred_fallthru
          _
      $region12: #{tpu_custom_call.1} parent=5 // pred_fallthru
        _
      %p184 = scmp.lt.s32.totalorder %s16, 2
      // Predicated region
      $region21: #{tpu_custom_call.1} parent=5 // pred_check
        %p185 = pneg %p184
      $region22: #{tpu_custom_call.1} parent=5 // pred_check_branch
        %187 = sbr.rel (%p185) target = $region24
      $region23: #{tpu_custom_call.1} parent=5 // pred_region
        // Predicated region
        $region25: #{tpu_custom_call.1} parent=23 // pred_check
          %p188 = pneg %p57
        $region26: #{tpu_custom_call.1} parent=23 // pred_check_branch
          %190 = sbr.rel (%p188) target = $region28
        $region27: #{tpu_custom_call.1} parent=23 // pred_region
          %s191 = sand.u32 %s47, 1
          %s192 = scalar_lea.sflag [#allocation3], %s191
          %s193 = sand.u32 %s47, 1
          %s194 = smul.addr %s193, 4
          %s195 = scalar_lea.vmem [#allocation2], %s194
          %197 = vsyncadd %s192, 0
          %s198 = sadd.s32 %s25, %s23
          %s199 = smul.addr %s198, 4
          %s200 = scalar_lea.hbm %s0, %s199
          %s202 = sshll.u32 %s200, 4
          %s203 = int_to_ptr.hbm [resolvable:$true] %s202
          %s204 = sshll.u32 %s195, 4
          %s205 = int_to_ptr.vmem [resolvable:$true] %s204
          %207 = dma.hbm_to_vmem [thread:$0]  %s203, 64, %s205, %s192
        $region28: #{tpu_custom_call.1} parent=23 // pred_fallthru
          _
      $region24: #{tpu_custom_call.1} parent=5 // pred_fallthru
        _
      %p208 = scmp.le.s32.totalorder 1, %s16
      %p209 = scmp.lt.s32.totalorder %s16, 3
      %p210 = pnand %p208, %p209
      %p211 = pneg %p210
      // Predicated region
      $region29: #{tpu_custom_call.1} parent=5 // pred_check
        _
      $region30: #{tpu_custom_call.1} parent=5 // pred_check_branch
        %213 = sbr.rel (%p210) target = $region32
      $region31: #{tpu_custom_call.1} parent=5 // pred_region
        %s214 = ssub.s32 %s16, 1
        %s215 = sand.u32 %s50, 1
        %s216 = scalar_lea.sflag [#allocation3], %s215
        %s217 = sand.u32 %s50, 1
        %s218 = smul.addr %s217, 4
        %s219 = scalar_lea.vmem [#allocation2], %s218
        // Predicated region
        $region33: #{tpu_custom_call.1} parent=31 // pred_check
          %p220 = pneg %p63
        $region34: #{tpu_custom_call.1} parent=31 // pred_check_branch
          %222 = sbr.rel (%p220) target = $region36
        $region35: #{tpu_custom_call.1} parent=31 // pred_region
          %224 = dma.done %s216, 64
        $region36: #{tpu_custom_call.1} parent=31 // pred_fallthru
          _
        // Predicated region
        $region37: #{tpu_custom_call.1} parent=31 // pred_check
          %p225 = pneg %p91
        $region38: #{tpu_custom_call.1} parent=31 // pred_check_branch
          %227 = sbr.rel (%p225) target = $region40
        $region39: #{tpu_custom_call.1} parent=31 // pred_region
          %229 = dma.done [#allocation6], 1024
        $region40: #{tpu_custom_call.1} parent=31 // pred_fallthru
          _
        %s230 = sand.u32 %s50, 1
        %s231 = scalar_lea.sflag [#allocation3], %s230
        %s232 = sand.u32 %s50, 1
        %s233 = smul.addr %s232, 4
        %s234 = scalar_lea.vmem [#allocation2], %s233
        %p235 = pneg %p63
        %p236 = pneg %p60
        %p237 = pneg %p91
        %p238 = pneg %p88
        %p239 = scmp.lt.s32.totalorder %s27, 0
        %s240 = scalar_select %p239, %s27, 0
        %s241 = scalar_lea.vmem %s2, %s240
        %p242 = pneg %p117
        %p243 = pneg %p114
        %p244 = pneg %p145
        %p245 = pneg %p142
        %s246 = sand.u32 %s132, 1
        %s247 = scalar_lea.sflag [#allocation4], %s246
        %s248 = sand.u32 %s132, 1
        %s249 = smul.addr %s248, 8
        %s250 = scalar_lea.vmem [#allocation7], %s249
        %s251 = smul.u32 16, %s28
        %p252 = scmp.lt.s32.totalorder %s27, 0
        %s253 = scalar_select %p252, %s27, 0
        %s254 = scalar_lea.vmem %s2, %s253
        %p255 = scmp.eq.s32.totalorder %s28, 0
        // Predicated region
        $region41: #{tpu_custom_call.1} parent=31 // pred_check
          %p256 = pneg %p255
        $region42: #{tpu_custom_call.1} parent=31 // pred_check_branch
          %258 = sbr.rel (%p256) target = $region44
        $region43: #{tpu_custom_call.1} parent=31 // pred_region
          %259 = vst [vmem:[%s250] sm:$0xff] 0.0
        $region44: #{tpu_custom_call.1} parent=31 // pred_fallthru
          _
        %v260 = vld [vmem:[%s250] sm:$0xff]
        %v261 = vld [vmem:[%s219] sm:$0xf]
        %v262 = vld [vmem:[#allocation5] sm:$0xf]
        %v263 = vld [vmem:[#allocation5 + $0x4] sm:$0xf]
        %v264 = vld [vmem:[#allocation5 + $0x8] sm:$0xf]
        %v265 = vld [vmem:[#allocation5 + $0xc] sm:$0xf]
        %v266 = vld [vmem:[#allocation5 + $0x10] sm:$0xf]
        %v267 = vld [vmem:[#allocation5 + $0x14] sm:$0xf]
        %v268 = vld [vmem:[#allocation5 + $0x18] sm:$0xf]
        %v269 = vld [vmem:[#allocation5 + $0x1c] sm:$0xf]
        %v270 = vld [vmem:[#allocation5 + $0x20] sm:$0xf]
        %v271 = vld [vmem:[#allocation5 + $0x24] sm:$0xf]
        %v272 = vld [vmem:[#allocation5 + $0x28] sm:$0xf]
        %v273 = vld [vmem:[#allocation5 + $0x2c] sm:$0xf]
        %v274 = vld [vmem:[#allocation5 + $0x30] sm:$0xf]
        %v275 = vld [vmem:[#allocation5 + $0x34] sm:$0xf]
        %v276 = vld [vmem:[#allocation5 + $0x38] sm:$0xf]
        %v277 = vld [vmem:[#allocation5 + $0x3c] sm:$0xf]
        %v294 = vunpack.c.l.b16 %v262
        %v295 = vunpack.c.l.b16 %v263
        %v296 = vunpack.c.l.b16 %v264
        %v297 = vunpack.c.l.b16 %v265
        %v298 = vunpack.c.l.b16 %v266
        %v299 = vunpack.c.l.b16 %v267
        %v300 = vunpack.c.l.b16 %v268
        %v301 = vunpack.c.l.b16 %v269
        %v302 = vunpack.c.l.b16 %v270
        %v303 = vunpack.c.l.b16 %v271
        %v304 = vunpack.c.l.b16 %v272
        %v305 = vunpack.c.l.b16 %v273
        %v306 = vunpack.c.l.b16 %v274
        %v307 = vunpack.c.l.b16 %v275
        %v308 = vunpack.c.l.b16 %v276
        %v309 = vunpack.c.l.b16 %v277
        %v310 = vpack.c.b16 %v295, %v294
        %v311 = vpack.c.b16 %v297, %v296
        %v312 = vpack.c.b16 %v299, %v298
        %v313 = vpack.c.b16 %v301, %v300
        %v314 = vpack.c.b16 %v303, %v302
        %v315 = vpack.c.b16 %v305, %v304
        %v316 = vpack.c.b16 %v307, %v306
        %v317 = vpack.c.b16 %v309, %v308
        %326 = vmatpush.bf16.msra.mxu0 %v317
        %327 = vmatpush.bf16.msra.mxu0 %v316
        %328 = vmatpush.bf16.msra.mxu0 %v315
        %329 = vmatpush.bf16.msra.mxu0 %v314
        %330 = vmatpush.bf16.msra.mxu0 %v313
        %331 = vmatpush.bf16.msra.mxu0 %v312
        %332 = vmatpush.bf16.msra.mxu0 %v311
        %333 = vmatpush.bf16.msra.mxu0 %v310
        %334 = vmatmul.bf16.gmra.mxu0 %v261
        %v335 = vpop.f32.mrf.mxu0
        %v336 = vadd.f32 0.0, %v335
        %v337 = vpop.f32.mrf.mxu0
        %338 = vdwg.mxu0
        %v339 = vadd.f32 %v260, %v336
        %340 = vst [vmem:[%s250] sm:$0xff] %v339
        // Predicated region
        $region45: #{tpu_custom_call.1} parent=31 // pred_check
          %p341 = pneg %p255
        $region46: #{tpu_custom_call.1} parent=31 // pred_check_branch
          %343 = sbr.rel (%p341) target = $region48
        $region47: #{tpu_custom_call.1} parent=31 // pred_region
          %v344 = vld [vmem:[%s250] sm:$0xff]
          %v345 = vld [vmem:[%s254] sm:$0x1]
          %v347 = vperm.slane %v345, 0
          %v349 = vadd.f32 %v344, %v347
          %v350 = vmax.f32 %v349, 0.0
          %351 = vst [vmem:[%s250] sm:$0xff] %v350
        $region48: #{tpu_custom_call.1} parent=31 // pred_fallthru
          _
        %s352 = sand.u32 %s132, 1
        %s353 = scalar_lea.sflag [#allocation4], %s352
        %s354 = sand.u32 %s132, 1
        %s355 = smul.addr %s354, 8
        %s356 = scalar_lea.vmem [#allocation7], %s355
        // Predicated region
        $region49: #{tpu_custom_call.1} parent=31 // pred_check
          %p357 = pneg %p142
        $region50: #{tpu_custom_call.1} parent=31 // pred_check_branch
          %359 = sbr.rel (%p357) target = $region52
        $region51: #{tpu_custom_call.1} parent=31 // pred_region
          %361 = vsyncadd %s353, 0
          %s362 = sadd.s32 %s27, %s26
          %s363 = smul.addr %s362, 8
          %s364 = scalar_lea.hbm %s3, %s363
          %s366 = sshll.u32 %s356, 4
          %s367 = int_to_ptr.vmem [resolvable:$true] %s366
          %s368 = sshll.u32 %s364, 4
          %s369 = int_to_ptr.hbm [resolvable:$true] %s368
          %371 = dma.vmem_to_hbm [thread:$0]  %s367, 128, %s369, %s353
        $region52: #{tpu_custom_call.1} parent=31 // pred_fallthru
          _
      $region32: #{tpu_custom_call.1} parent=5 // pred_fallthru
        _
      %p372 = scmp.le.s32.totalorder 2, %s16
      // Predicated region
      $region53: #{tpu_custom_call.1} parent=5 // pred_check
        %p373 = pneg %p372
      $region54: #{tpu_custom_call.1} parent=5 // pred_check_branch
        %375 = sbr.rel (%p373) target = $region56
      $region55: #{tpu_custom_call.1} parent=5 // pred_region
        %s376 = ssub.s32 %s16, 2
        // Predicated region
        $region57: #{tpu_custom_call.1} parent=55 // pred_check
          %p377 = pneg %p148
        $region58: #{tpu_custom_call.1} parent=55 // pred_check_branch
          %379 = sbr.rel (%p377) target = $region60
        $region59: #{tpu_custom_call.1} parent=55 // pred_region
          %s380 = sand.u32 %s133, 1
          %s381 = scalar_lea.sflag [#allocation4], %s380
          %s382 = sand.u32 %s133, 1
          %s383 = smul.addr %s382, 8
          %s384 = scalar_lea.vmem [#allocation7], %s383
          %386 = dma.done %s381, 128
        $region60: #{tpu_custom_call.1} parent=55 // pred_fallthru
          _
      $region56: #{tpu_custom_call.1} parent=5 // pred_fallthru
        _
    $region6: #{tpu_custom_call.1} parent=1 // loop_footer
      %s20 = sadd.s32 1, %s16
    $region7: #{tpu_custom_call.1} parent=1 // loop_footer_branch
      %15 = sbr.rel target = $region3
    $region8: #{tpu_custom_call.1} parent=1 // loop_exit
      _
    %387 = vsyncpa [#allocation3], 1
    %s388 = scalar_lea.sflag [#allocation3], 1
    %389 = vsyncpa %s388, 1
    %390 = vsyncpa [#allocation6], 1
    %391 = vsyncpa [#allocation4], 1
    %s392 = scalar_lea.sflag [#allocation4], 1
    %393 = vsyncpa %s392, 1

</llo_original>
